<compile_context>
chip_gen: v7x
topology: tpu7x:2x2x1
jax: 0.10.0
libtpu: 0.0.40
codegen_flags: <defaults>
</compile_context>

<pallas_src>
import functools

import jax
import jax.numpy as jnp
from jax import lax
from jax.experimental import pallas as pl
from jax.experimental.pallas import tpu as pltpu


def _round_up(x, m):
    return ((x + m - 1) // m) * m


def _cdiv(a, b):
    return (a + b - 1) // b


def _sublane(dtype):
    # Packed sublane count per dtype width (f32=8, bf16=16, int8/fp8=32).
    return {4: 8, 2: 16, 1: 32}.get(jnp.dtype(dtype).itemsize, 8)


def _vmem_budget_bytes():
    # Per-generation usable-VMEM budget: v5e/v6e have 128 MiB per TensorCore,
    # v7x only 64 MiB.  Keep ~25% headroom for compiler temporaries.
    try:
        cap = pltpu.get_tpu_info().vmem_capacity_bytes
    except Exception:
        cap = 64 * 1024 * 1024          # conservative (v7x-sized) default
    return int(cap * 3 // 4)


# ----------------------------------------------------------------------------
# Kernels
# ----------------------------------------------------------------------------
def _fused_kernel_resident(x_ref, w_ref, b_ref, o_ref, *, masked_start, tile_m):
    """1-D grid over M tiles; whole [K, N] weight + bias resident in VMEM."""
    i = pl.program_id(0)                     # bound at top level (NOT inside pl.when)
    y = jnp.dot(x_ref[...], w_ref[...], preferred_element_type=jnp.float32)
    y = y + b_ref[...].astype(jnp.float32)
    out = jnp.tanh(y)
    rows = i * tile_m + lax.broadcasted_iota(jnp.int32, y.shape, 0)
    hard = jnp.clip(10.0 * y, -100.0, 100.0)
    # Unconditional select + single store: cheap VPU work, no reload of o_ref.
    o_ref[...] = jnp.where(rows >= masked_start, hard, out).astype(o_ref.dtype)


def _fused_kernel_tiled(x_ref, w_ref, b_ref, o_ref, acc_ref, *, masked_start, tile_m):
    """(M, N, K) grid, K innermost reduction with f32 VMEM accumulator."""
    i = pl.program_id(0)                     # hoisted out of the pl.when branches
    k = pl.program_id(2)
    nk = pl.num_programs(2)

    @pl.when(k == 0)
    def _init():
        acc_ref[...] = jnp.zeros_like(acc_ref)

    acc_ref[...] += jnp.dot(x_ref[...], w_ref[...],
                            preferred_element_type=jnp.float32)

    @pl.when(k == nk - 1)
    def _finalize():
        y = acc_ref[...] + b_ref[...].astype(jnp.float32)
        out = jnp.tanh(y)
        rows = i * tile_m + lax.broadcasted_iota(jnp.int32, y.shape, 0)
        hard = jnp.clip(10.0 * y, -100.0, 100.0)
        o_ref[...] = jnp.where(rows >= masked_start, hard, out).astype(o_ref.dtype)


# ----------------------------------------------------------------------------
# Wrapper
# ----------------------------------------------------------------------------
def custom_activation_layer(x, weight, bias, *, n_masked_rows=3,
                            tile_m=512, tile_n=512, tile_k=1024,
                            compute_dtype=None, force_tiled=False):
    """x: [B, K]; weight: [N, K] (torch nn.Linear layout); bias: [N]."""
    B, K = x.shape
    N, Kw = weight.shape
    assert Kw == K, "weight must be [output_size, input_size]"
    assert bias.shape == (N,)

    out_dtype = x.dtype
    if compute_dtype is not None:
        # e.g. jnp.bfloat16 on v6e/v7x for MXU throughput (accumulation stays f32).
        x = x.astype(compute_dtype)
        weight = weight.astype(compute_dtype)

    # Canonical [K, N] MXU layout; one cheap XLA op per call (cache it upstream).
    w_t = weight.T

    elem = jnp.dtype(x.dtype).itemsize
    out_elem = jnp.dtype(out_dtype).itemsize
    sub = _sublane(x.dtype)
    budget = _vmem_budget_bytes()
    masked_start = B - n_masked_rows         # may be negative (B < 3): all rows masked

    # ---- M tiling with minimal padding --------------------------------------
    num_m = max(1, _cdiv(B, tile_m))
    tm = _round_up(_cdiv(B, num_m), sub)
    Mp = tm * num_m

    # ---- path selection ------------------------------------------------------
    # Resident path working set (count double buffers conservatively).
    resident_need = (2 * (tm * K + K * N + N) * elem
                     + 2 * tm * N * out_elem
                     + 4 * tm * N)           # f32 epilogue temporaries
    use_resident = (not force_tiled) and resident_need <= budget

    if use_resident:
        x_p = jnp.pad(x, ((0, Mp - B), (0, 0))) if Mp != B else x
        b2d = bias.reshape(1, N)
        kernel = functools.partial(_fused_kernel_resident,
                                   masked_start=masked_start, tile_m=tm)
        cost = pl.CostEstimate(
            flops=2 * Mp * N * K,
            transcendentals=Mp * N,
            bytes_accessed=elem * (Mp * K + K * N + N) + out_elem * Mp * N,
        )
        out_p = pl.pallas_call(
            kernel,
            out_shape=jax.ShapeDtypeStruct((Mp, N), out_dtype),
            grid=(num_m,),
            in_specs=[
                pl.BlockSpec((tm, K), lambda i: (i, 0)),
                # Constant block index -> weight fetched from HBM exactly once and
                # stays resident across all M tiles.
                pl.BlockSpec((K, N), lambda i: (0, 0)),
                pl.BlockSpec((1, N), lambda i: (0, 0)),
            ],
            out_specs=pl.BlockSpec((tm, N), lambda i: (i, 0)),
            compiler_params=pltpu.CompilerParams(
                # Single parallel axis; with num_m == 1 (tiny problems) one v7x
                # TensorCore idles, which is fine at this size.
                dimension_semantics=("parallel",),
                vmem_limit_bytes=budget,
            ),
            cost_estimate=cost,
        )(x_p, w_t, b2d)
        return out_p[:B, :]

    # ---- tiled fallback (weight too large for VMEM) --------------------------
    num_n = max(1, _cdiv(N, tile_n))
    tn = _round_up(_cdiv(N, num_n), 128)
    num_k = max(1, _cdiv(K, tile_k))
    tk = _round_up(_cdiv(K, num_k), 128)

    def _need(tm_, tn_, tk_):
        return (2 * (tm_ * tk_ + tk_ * tn_ + tn_) * elem
                + 2 * tm_ * tn_ * out_elem + 4 * tm_ * tn_)

    while _need(tm, tn, tk) > budget and tk > 128:
        num_k += 1
        tk = _round_up(_cdiv(K, num_k), 128)
    while _need(tm, tn, tk) > budget and tn > 128:
        num_n += 1
        tn = _round_up(_cdiv(N, num_n), 128)

    Np, Kp = tn * num_n, tk * num_k

    x_p = jnp.pad(x, ((0, Mp - B), (0, Kp - K))) if (Mp != B or Kp != K) else x
    w_p = (jnp.pad(w_t, ((0, Kp - K), (0, Np - N)))
           if (Kp != K or Np != N) else w_t)
    b_p = jnp.pad(bias, (0, Np - N)) if Np != N else bias
    b2d = b_p.reshape(1, Np)

    kernel = functools.partial(_fused_kernel_tiled,
                               masked_start=masked_start, tile_m=tm)
    cost = pl.CostEstimate(
        flops=2 * Mp * Np * Kp,
        transcendentals=Mp * Np,
        # Honest accounting: weight re-streamed per M tile, x per N tile.
        bytes_accessed=elem * (Mp * Kp * num_n + Kp * Np * num_m + Np)
                       + out_elem * Mp * Np,
    )
    out_p = pl.pallas_call(
        kernel,
        out_shape=jax.ShapeDtypeStruct((Mp, Np), out_dtype),
        grid=(num_m, num_n, num_k),
        in_specs=[
            pl.BlockSpec((tm, tk), lambda i, j, k: (i, k)),
            pl.BlockSpec((tk, tn), lambda i, j, k: (k, j)),
            pl.BlockSpec((1, tn), lambda i, j, k: (0, j)),
        ],
        out_specs=pl.BlockSpec((tm, tn), lambda i, j, k: (i, j)),
        scratch_shapes=[pltpu.VMEM((tm, tn), jnp.float32)],
        compiler_params=pltpu.CompilerParams(
            dimension_semantics=("parallel", "parallel", "arbitrary"),
            vmem_limit_bytes=budget,
        ),
        cost_estimate=cost,
    )(x_p, w_p, b2d)
    return out_p[:B, :N]


# ----------------------------------------------------------------------------
# Reference + tests
# ----------------------------------------------------------------------------
def reference(x, weight, bias, n_masked_rows=3):
    y = x @ weight.T + bias
    tanh_out = jnp.tanh(y)
    hardtanh_out = jnp.clip(10.0 * y, -100.0, 100.0)
    mask = jnp.ones_like(y, dtype=bool).at[-n_masked_rows:].set(False)
    return jnp.where(mask, tanh_out, hardtanh_out)


if __name__ == "__main__":
    key = jax.random.PRNGKey(0)

    # --- 1. small shape matching the module's intent (weight-resident path) ---
    k_x, k_w, k_b = jax.random.split(key, 3)
    B, input_size, output_size = 8, 32, 32
    x = jax.random.normal(k_x, (B, input_size), dtype=jnp.float32)
    bound = 1.0 / (input_size ** 0.5)
    weight = jax.random.uniform(k_w, (output_size, input_size),
                                minval=-bound, maxval=bound, dtype=jnp.float32)
    bias = jax.random.uniform(k_b, (output_size,),
                              minval=-bound, maxval=bound, dtype=jnp.float32)
    out = jax.block_until_ready(custom_activation_layer(x, weight, bias))
    ref = reference(x, weight, bias)
    assert out.shape == (B, output_size)
    assert jnp.allclose(out, ref, atol=1e-4, rtol=1e-4), "mismatch (small / resident)"

    # --- 2. non-aligned shape, multiple M tiles; masked rows straddle a tile ---
    k_x2, k_w2, k_b2 = jax.random.split(jax.random.PRNGKey(1), 3)
    B2, K2, N2 = 33, 160, 200
    x2 = jax.random.normal(k_x2, (B2, K2), dtype=jnp.float32)
    bound2 = 1.0 / (K2 ** 0.5)
    w2 = jax.random.uniform(k_w2, (N2, K2), minval=-bound2, maxval=bound2,
                            dtype=jnp.float32)
    b2 = jax.random.uniform(k_b2, (N2,), minval=-bound2, maxval=bound2,
                            dtype=jnp.float32)
    out2 = jax.block_until_ready(custom_activation_layer(x2, w2, b2, tile_m=16))
    ref2 = reference(x2, w2, b2)
    assert out2.shape == (B2, N2)
    assert jnp.allclose(out2, ref2, atol=1e-4, rtol=1e-4), "mismatch (multi-M-tile)"

    # --- 3. force the tiled K-reduction fallback on a small shape -------------
    k_x3, k_w3, k_b3 = jax.random.split(jax.random.PRNGKey(2), 3)
    B3, K3, N3 = 40, 256, 256
    x3 = jax.random.normal(k_x3, (B3, K3), dtype=jnp.float32)
    bound3 = 1.0 / (K3 ** 0.5)
    w3 = jax.random.uniform(k_w3, (N3, K3), minval=-bound3, maxval=bound3,
                            dtype=jnp.float32)
    b3 = jax.random.uniform(k_b3, (N3,), minval=-bound3, maxval=bound3,
                            dtype=jnp.float32)
    out3 = jax.block_until_ready(
        custom_activation_layer(x3, w3, b3, tile_m=16, tile_n=128, tile_k=128,
                                force_tiled=True))
    ref3 = reference(x3, w3, b3)
    assert out3.shape == (B3, N3)
    assert jnp.allclose(out3, ref3, atol=1e-4, rtol=1e-4), "mismatch (tiled fallback)"

    print("KERNEL_OK")
</pallas_src>

<mosaic_0001>
module attributes {stable_mosaic.version = 11 : i64} {
  func.func @_fused_kernel_resident(%arg0: i32, %arg1: memref<8x32xf32, #tpu.memory_space<vmem>>, %arg2: memref<32x32xf32, #tpu.memory_space<vmem>>, %arg3: memref<1x32xf32, #tpu.memory_space<vmem>>, %arg4: memref<8x32xf32, #tpu.memory_space<vmem>>) attributes {dimension_semantics = [#tpu.dimension_semantics<parallel>], iteration_bounds = array<i64: 1>, scalar_prefetch = 0 : i64, scratch_operands = 0 : i64, tpu.core_type = #tpu.core_type<tc>, window_params = [{transform_indices = @transform_0, window_bounds = array<i64: 8, 32>}, {pipeline_mode = #tpu.pipeline_mode<synchronous>, transform_indices = @transform_1, window_bounds = array<i64: 32, 32>}, {pipeline_mode = #tpu.pipeline_mode<synchronous>, transform_indices = @transform_2, window_bounds = array<i64: 1, 32>}, {transform_indices = @transform_3, window_bounds = array<i64: 8, 32>}]} {
    %c0 = arith.constant 0 : index
    %c0_0 = arith.constant 0 : index
    %0 = vector.load %arg1[%c0, %c0_0] : memref<8x32xf32, #tpu.memory_space<vmem>>, vector<8x32xf32>
    %c0_1 = arith.constant 0 : index
    %c0_2 = arith.constant 0 : index
    %1 = vector.load %arg2[%c0_1, %c0_2] : memref<32x32xf32, #tpu.memory_space<vmem>>, vector<32x32xf32>
    %cst = arith.constant dense<0.000000e+00> : vector<8x32xf32>
    %2 = tpu.matmul %0, %1, %cst {dimension_numbers = #tpu.dot_dimension_numbers<[1], [0], [0], [1], [0, 0, 1, 1], [], []>} : vector<8x32xf32>, vector<32x32xf32>, vector<8x32xf32> -> vector<8x32xf32>
    %c0_3 = arith.constant 0 : index
    %c0_4 = arith.constant 0 : index
    %3 = vector.load %arg3[%c0_3, %c0_4] : memref<1x32xf32, #tpu.memory_space<vmem>>, vector<1x32xf32>
    %4 = vector.broadcast %3 : vector<1x32xf32> to vector<8x32xf32>
    %5 = arith.addf %2, %4 : vector<8x32xf32>
    %6 = math.tanh %5 : vector<8x32xf32>
    %c8_i32 = arith.constant 8 : i32
    %7 = arith.muli %arg0, %c8_i32 : i32
    %8 = tpu.iota {dimensions = array<i32: 0>} : vector<8x32xi32>
    %9 = vector.broadcast %7 : i32 to vector<8x32xi32>
    %10 = arith.addi %9, %8 : vector<8x32xi32>
    %cst_5 = arith.constant 1.000000e+01 : f32
    %11 = vector.broadcast %cst_5 : f32 to vector<8x32xf32>
    %12 = arith.mulf %11, %5 : vector<8x32xf32>
    %cst_6 = arith.constant -1.000000e+02 : f32
    %cst_7 = arith.constant 1.000000e+02 : f32
    %13 = vector.broadcast %cst_6 : f32 to vector<8x32xf32>
    %14 = arith.maximumf %13, %12 : vector<8x32xf32>
    %15 = vector.broadcast %cst_7 : f32 to vector<8x32xf32>
    %16 = arith.minimumf %15, %14 : vector<8x32xf32>
    %c5_i32 = arith.constant 5 : i32
    %17 = vector.broadcast %c5_i32 : i32 to vector<8x32xi32>
    %18 = arith.cmpi sge, %10, %17 : vector<8x32xi32>
    %19 = arith.select %18, %16, %6 : vector<8x32xi1>, vector<8x32xf32>
    %c0_8 = arith.constant 0 : index
    %c0_9 = arith.constant 0 : index
    %20 = vector.load %arg4[%c0_8, %c0_9] : memref<8x32xf32, #tpu.memory_space<vmem>>, vector<8x32xf32>
    tpu.vector_store %arg4[%c0_8, %c0_9], %19 {strides = array<i32>} : memref<8x32xf32, #tpu.memory_space<vmem>>, vector<8x32xf32>,
    return
  }
  func.func @transform_0(%arg0: i32) -> (i32, i32) {
    %c0_i32 = arith.constant 0 : i32
    %c0_i32_0 = arith.constant 0 : i32
    return %arg0, %c0_i32 : i32, i32
  }
  func.func @transform_1(%arg0: i32) -> (i32, i32) {
    %c0_i32 = arith.constant 0 : i32
    %c0_i32_0 = arith.constant 0 : i32
    %c0_i32_1 = arith.constant 0 : i32
    return %c0_i32, %c0_i32_0 : i32, i32
  }
  func.func @transform_2(%arg0: i32) -> (i32, i32) {
    %c0_i32 = arith.constant 0 : i32
    %c0_i32_0 = arith.constant 0 : i32
    %c0_i32_1 = arith.constant 0 : i32
    return %c0_i32, %c0_i32_0 : i32, i32
  }
  func.func @transform_3(%arg0: i32) -> (i32, i32) {
    %c0_i32 = arith.constant 0 : i32
    %c0_i32_0 = arith.constant 0 : i32
    return %arg0, %c0_i32 : i32, i32
  }
}

</mosaic_0001>

<llo_original>
// kernel: tpu_custom_call.1
$region0: #{tpu_custom_call.1}
  #allocation0 [shape = 'u32[]', space=smem, size = 0x4, offset = 0x4, fixed_abs, tag = 'smem constant byte address 0x4 - core index']
  #allocation1 [shape = 'u32[144,128]{1,0:T(1,128)}', space=vmem, size = 0x12000, scoped, tag = 'internal scratch']
  %s0 = inlined_call_operand.hbm [shape: f32[8,32], index: 0, kind: input, shape index: {}]
  %s1 = inlined_call_operand.hbm [shape: f32[32,32], index: 1, kind: input, shape index: {}]
  %s2 = inlined_call_operand.vmem [shape: f32[1,32], index: 2, kind: input, shape index: {}]
  %s3 = inlined_call_operand.hbm [shape: f32[8,32], index: 3, kind: output, shape index: {}]
  %s4 = sld [smem:[#allocation0]]
  $region30: #{tpu_custom_call.1} parent=0
    _
  %s6 = ssub.s32 1, %s4
  %s7 = scalar_select 0, %s6, %s4
  $region1: #{tpu_custom_call.1} parent=0
    #allocation2 [shape = 'u8[4096]{0}', space=vmem, size = 0x1000, scoped, tag = 'input window, operand 0, single buffered']
    #allocation3 [shape = 's32[1]{0}', space=sflag, size = 0x4, scoped, tag = 'scoped memory for tpu_custom_call.1']
    #allocation4 [shape = 's32[1]{0}', space=sflag, size = 0x4, scoped, tag = 'scoped memory for tpu_custom_call.1']
    #allocation5 [shape = 'u8[16384]{0}', space=vmem, size = 0x4000, scoped, tag = 'input window, operand 1, single buffered']
    #allocation6 [shape = 's32[1]{0}', space=sflag, size = 0x4, scoped, tag = 'scoped memory for tpu_custom_call.1']
    #allocation7 [shape = 'u8[4096]{0}', space=vmem, size = 0x1000, scoped, tag = 'output window, operand 0, single buffered']
    %8 = vsyncpa [#allocation3], 0
    %9 = vsyncpa [#allocation6], 0
    %10 = vsyncpa [#allocation4], 0
    // Predicated region
    $region2: #{tpu_custom_call.1} parent=1 // pred_check
      _
    $region3: #{tpu_custom_call.1} parent=1 // pred_check_branch
      %12 = sbr.rel (0) target = $region5
    $region4: #{tpu_custom_call.1} parent=1 // pred_region
      %s14 = ssub.s32 128, 128
      %15 = vsyncadd [#allocation3], %s14
      %s17 = sshll.u32 [#allocation2], 4
      %s18 = int_to_ptr.vmem [resolvable:$true] %s17
      %20 = dma.hbm_to_vmem [thread:$0]  %s0, 128, %s18, [#allocation3]
    $region5: #{tpu_custom_call.1} parent=1 // pred_fallthru
      _
    // Predicated region
    $region6: #{tpu_custom_call.1} parent=1 // pred_check
      _
    $region7: #{tpu_custom_call.1} parent=1 // pred_check_branch
      %22 = sbr.rel (0) target = $region9
    $region8: #{tpu_custom_call.1} parent=1 // pred_region
      %s24 = ssub.s32 512, 512
      %25 = vsyncadd [#allocation6], %s24
      %s26 = sshll.u32 [#allocation5], 4
      %s27 = int_to_ptr.vmem [resolvable:$true] %s26
      %32 = dma.hbm_to_vmem [thread:$0]  %s1, 512, %s27, [#allocation6], 128, 128, 8
    $region9: #{tpu_custom_call.1} parent=1 // pred_fallthru
      _
    // Predicated region
    $region10: #{tpu_custom_call.1} parent=1 // pred_check
      _
    $region11: #{tpu_custom_call.1} parent=1 // pred_check_branch
      %34 = sbr.rel (0) target = $region13
    $region12: #{tpu_custom_call.1} parent=1 // pred_region
      _
    $region13: #{tpu_custom_call.1} parent=1 // pred_fallthru
      _
    // Predicated region
    $region14: #{tpu_custom_call.1} parent=1 // pred_check
      _
    $region15: #{tpu_custom_call.1} parent=1 // pred_check_branch
      %36 = sbr.rel (0) target = $region17
    $region16: #{tpu_custom_call.1} parent=1 // pred_region
      %37 = dma.done [#allocation3], 128
    $region17: #{tpu_custom_call.1} parent=1 // pred_fallthru
      _
    // Predicated region
    $region18: #{tpu_custom_call.1} parent=1 // pred_check
      _
    $region19: #{tpu_custom_call.1} parent=1 // pred_check_branch
      %39 = sbr.rel (0) target = $region21
    $region20: #{tpu_custom_call.1} parent=1 // pred_region
      %40 = dma.done [#allocation6], 512
    $region21: #{tpu_custom_call.1} parent=1 // pred_fallthru
      _
    %v41 = vld [vmem:[#allocation2] sm:$0xff]
    %v42 = vld [vmem:[#allocation5] sm:$0xff]
    %v43 = vld [vmem:[#allocation5 + $0x8] sm:$0xff]
    %v44 = vld [vmem:[#allocation5 + $0x10] sm:$0xff]
    %v45 = vld [vmem:[#allocation5 + $0x18] sm:$0xff]
    %v46 = vld [vmem:[%s2] sm:$0x1]
    %v48 = vlaneseq
    %v49 = vshrl.u32 %v48, 7
    %v50 = vsub.s32 0, %v49
    %v51 = vrot.slane %v46, %v50
    %vm53 = vcmask 261120
    %v55 = vsel %vm53, %v41, 0
    %57 = vmatprep.subr.mxu0 0.0
    %58 = vmatpush1.msra.mxu0 %v42
    %59 = vmatprep.subr.mxu0 0.0
    %60 = vmatpush1.msra.mxu0 %v43
    %61 = vmatprep.subr.mxu0 0.0
    %62 = vmatpush1.msra.mxu0 %v44
    %63 = vmatprep.subr.mxu0 0.0
    %64 = vmatpush1.msra.mxu0 %v45
    %65 = vmatprep.subr.mxu0 0.0
    %66 = vmatpush1.msra.mxu0 0.0
    %67 = vmatprep.subr.mxu0 0.0
    %68 = vmatpush1.msra.mxu0 0.0
    %69 = vmatprep.subr.mxu0 0.0
    %70 = vmatpush1.msra.mxu0 0.0
    %71 = vmatprep.subr.mxu0 0.0
    %72 = vmatpush1.msra.mxu0 0.0
    %73 = vmatprep.subr.mxu0 0.0
    %74 = vmatpush1.msra.mxu0 0.0
    %75 = vmatprep.subr.mxu0 0.0
    %76 = vmatpush1.msra.mxu0 0.0
    %77 = vmatprep.subr.mxu0 0.0
    %78 = vmatpush1.msra.mxu0 0.0
    %79 = vmatprep.subr.mxu0 0.0
    %80 = vmatpush1.msra.mxu0 0.0
    %81 = vmatprep.subr.mxu0 0.0
    %82 = vmatpush1.msra.mxu0 0.0
    %83 = vmatprep.subr.mxu0 0.0
    %84 = vmatpush1.msra.mxu0 0.0
    %85 = vmatprep.subr.mxu0 0.0
    %86 = vmatpush1.msra.mxu0 0.0
    %87 = vmatprep.subr.mxu0 0.0
    %88 = vmatpush1.msra.mxu0 0.0
    %89 = vmatprep.subr.mxu0 0.0
    %90 = vmatpush1.msra.mxu0 0.0
    %91 = vmatprep.subr.mxu0 0.0
    %92 = vmatpush1.msra.mxu0 0.0
    %93 = vmatprep.subr.mxu0 0.0
    %94 = vmatpush1.msra.mxu0 0.0
    %95 = vmatprep.subr.mxu0 0.0
    %96 = vmatpush1.msra.mxu0 0.0
    %97 = vmatprep.subr.mxu0 0.0
    %98 = vmatpush1.msra.mxu0 0.0
    %99 = vmatprep.subr.mxu0 0.0
    %100 = vmatpush1.msra.mxu0 0.0
    %101 = vmatprep.subr.mxu0 0.0
    %102 = vmatpush1.msra.mxu0 0.0
    %103 = vmatprep.subr.mxu0 0.0
    %104 = vmatpush1.msra.mxu0 0.0
    %105 = vmatprep.subr.mxu0 0.0
    %106 = vmatpush1.msra.mxu0 0.0
    %107 = vmatprep.subr.mxu0 0.0
    %108 = vmatpush1.msra.mxu0 0.0
    %109 = vmatprep.subr.mxu0 0.0
    %110 = vmatpush1.msra.mxu0 0.0
    %111 = vmatprep.subr.mxu0 0.0
    %112 = vmatpush1.msra.mxu0 0.0
    %113 = vmatprep.subr.mxu0 0.0
    %114 = vmatpush1.msra.mxu0 0.0
    %115 = vmatprep.subr.mxu0 0.0
    %116 = vmatpush1.msra.mxu0 0.0
    %117 = vmatprep.subr.mxu0 0.0
    %118 = vmatpush1.msra.mxu0 0.0
    %119 = vmatprep.subr.mxu0 0.0
    %120 = vmatpush1.msra.mxu0 0.0
    %121 = vmatprep.mubr.f32.mxu0 0.0
    %122 = vmatmul.mubr.f32.gmra.mrb[0].mxu0 %v55
    %v123 = vpop.f32.mrb[0].mxu0
    %v124 = vadd.f32 %v51, %v123
    %v125 = vpop.f32.mrb[0].mxu0
    %126 = vdwg.mxu0
    %v127 = vtanh.pop %v124
    %s128 = smul.u32 0, 8
    %v129 = vlaneseq
    %v130 = vshrl.u32 %v129, 7
    %v131 = vstv %s128
    %v132 = vadd.s32 %v131, %v130
    %v133 = vmul.f32 %v124, 10.0
    %v134 = vmax.f32 %v133, -100.0
    %v135 = vmin.f32 %v134, 100.0
    %vm136 = vcmp.ge.s32.totalorder %v132, 5
    %v137 = vsel %vm136, %v135, %v127
    %138 = vst.msk [vmem:[#allocation7] sm:$0xff] %vm53, %v137
    // Predicated region
    $region22: #{tpu_custom_call.1} parent=1 // pred_check
      _
    $region23: #{tpu_custom_call.1} parent=1 // pred_check_branch
      %140 = sbr.rel (0) target = $region25
    $region24: #{tpu_custom_call.1} parent=1 // pred_region
      %s142 = ssub.s32 128, 128
      %143 = vsyncadd [#allocation4], %s142
      %s145 = sshll.u32 [#allocation7], 4
      %s146 = int_to_ptr.vmem [resolvable:$true] %s145
      %148 = dma.vmem_to_hbm [thread:$0]  %s146, 128, %s3, [#allocation4]
    $region25: #{tpu_custom_call.1} parent=1 // pred_fallthru
      _
    // Predicated region
    $region26: #{tpu_custom_call.1} parent=1 // pred_check
      _
    $region27: #{tpu_custom_call.1} parent=1 // pred_check_branch
      %150 = sbr.rel (0) target = $region29
    $region28: #{tpu_custom_call.1} parent=1 // pred_region
      %151 = dma.done [#allocation4], 128
    $region29: #{tpu_custom_call.1} parent=1 // pred_fallthru
      _
    %152 = vsyncpa [#allocation3], 1
    %153 = vsyncpa [#allocation6], 1
    %154 = vsyncpa [#allocation4], 1

</llo_original>
